<compile_context>
chip_gen: v7x
topology: tpu7x:2x2x1
jax: 0.10.0
libtpu: 0.0.40
codegen_flags: <defaults>
</compile_context>

<pallas_src>
import functools

import jax
import jax.numpy as jnp
from jax.experimental import pallas as pl
from jax.experimental.pallas import tpu as pltpu


def _round_up(x, m):
    return ((x + m - 1) // m) * m


def _mva_kernel(num_views, text_ref, mv_ref, a_ref, w_ref, fusion_ref, attn_ref):
    # text_ref:   (BC, L,  Td)       -- raw text features
    # mv_ref:     (BC, Vp, Fp)       -- multiview features, zero padded to 128/128
    # a_ref:      (Td, Fp)           -- A = Wt @ Wv^T, zero padded to Fp
    # w_ref:      (1,  Fp)           -- w = Wv @ bt,   zero padded to Fp
    # fusion_ref: (BC, L,  Fp)       -- padded fusion output (lane dense)
    # attn_ref:   (BC, L,  Vp)       -- padded attention output (lane dense)
    t = text_ref[...]                          # (BC, L, Td)
    mv = mv_ref[...]                           # (BC, Vp, Fp)

    # (BC, L, Fp): one big (BC*L, Td) @ (Td, Fp) projection on the MXU.
    ta = jax.lax.dot_general(
        t, a_ref[...], (((2,), (0,)), ((), ())),
        preferred_element_type=jnp.float32)

    # scores[b, l, v] = ta[b, l, :] . mv[b, v, :]   (no transpose materialized)
    scores = jax.lax.dot_general(
        ta, mv, (((2,), (2,)), ((0,), (0,))),
        preferred_element_type=jnp.float32)    # (BC, L, Vp)

    # View-dependent bias term (mv @ (Wv bt)); terms constant over the view
    # axis cancel inside the softmax and are dropped.
    w_row = w_ref[...].reshape(1, 1, w_ref.shape[-1])      # (1, 1, Fp)
    q = jnp.sum(mv * w_row, axis=-1)                       # (BC, Vp)
    scores = scores + q[:, None, :]                        # (BC, L, Vp)

    # Mask out padded view lanes before the softmax.
    v_ids = jax.lax.broadcasted_iota(jnp.int32, scores.shape, 2)
    scores = jnp.where(v_ids < num_views, scores, jnp.float32(-1e30))

    # Softmax over views (EUP reciprocal instead of VALU divide).
    m = jnp.max(scores, axis=-1, keepdims=True)
    e = jnp.exp(scores - m)
    denom = jnp.sum(e, axis=-1, keepdims=True)
    attn = e * pl.reciprocal(denom, approx=True)           # (BC, L, Vp)

    # Fusion with the ORIGINAL (padded) multiview features.
    fusion = jax.lax.dot_general(
        attn, mv, (((2,), (1,)), ((0,), (0,))),
        preferred_element_type=jnp.float32)                # (BC, L, Fp)

    fusion_ref[...] = fusion.astype(fusion_ref.dtype)
    attn_ref[...] = attn.astype(attn_ref.dtype)


def multiview_attention(text_feature, multiview_feature,
                        w_text, b_text, w_vis, b_vis, *, num_chunks=2):
    """Forward pass of Multiview_Attention.

    text_feature:        (B, L, text_dim)
    multiview_feature:   (B, V, visualcnn_dim)
    w_text: (text_dim, G), b_text: (G,)   [nn.Linear weights stored as (in, out)]
    w_vis:  (visualcnn_dim, G), b_vis: (G,)
    Returns (multiview_fusion (B, L, visualcnn_dim), attention_matrix (B, L, V)).
    """
    B, L, Td = text_feature.shape
    _, V, Vd = multiview_feature.shape
    G = w_text.shape[1]
    assert w_text.shape == (Td, G) and w_vis.shape == (Vd, G)

    # Keep a 2-way parallel axis for v7x's dual TensorCores when B allows it;
    # otherwise fully fold the batch into one grid step.
    if B % num_chunks != 0 or num_chunks < 1:
        num_chunks = 1
    bc = B // num_chunks

    # Algebraic fusion of the two Linear layers (G dimension eliminated).
    a_mat = (w_text @ w_vis.T).astype(jnp.float32)          # (Td, Vd)
    w_vec = (w_vis @ b_text).astype(jnp.float32)            # (Vd,)

    # Lane-dense padding of the view and visual-feature axes.
    v_pad = _round_up(V, 128)
    f_pad = _round_up(Vd, 128)
    mv_p = jnp.pad(multiview_feature.astype(jnp.float32),
                   ((0, 0), (0, v_pad - V), (0, f_pad - Vd)))
    a_p = jnp.pad(a_mat, ((0, 0), (0, f_pad - Vd)))
    w_p = jnp.pad(w_vec, (0, f_pad - Vd)).reshape(1, f_pad)

    out_shapes = (
        jax.ShapeDtypeStruct((B, L, f_pad), jnp.float32),   # padded fusion
        jax.ShapeDtypeStruct((B, L, v_pad), jnp.float32),   # padded attention
    )

    grid_spec = pltpu.PrefetchScalarGridSpec(
        num_scalar_prefetch=0,
        grid=(num_chunks,),
        in_specs=[
            pl.BlockSpec((bc, L, Td), lambda c: (c, 0, 0)),
            pl.BlockSpec((bc, v_pad, f_pad), lambda c: (c, 0, 0)),
            pl.BlockSpec((Td, f_pad), lambda c: (0, 0)),
            pl.BlockSpec((1, f_pad), lambda c: (0, 0)),
        ],
        out_specs=[
            pl.BlockSpec((bc, L, f_pad), lambda c: (c, 0, 0)),
            pl.BlockSpec((bc, L, v_pad), lambda c: (c, 0, 0)),
        ],
    )

    fusion_p, attn_p = pl.pallas_call(
        functools.partial(_mva_kernel, V),
        out_shape=out_shapes,
        grid_spec=grid_spec,
        compiler_params=pltpu.CompilerParams(
            dimension_semantics=("parallel",)),
    )(text_feature.astype(jnp.float32), mv_p, a_p, w_p)

    # Slice the lane padding off outside the kernel (cheap XLA slice).
    return fusion_p[:, :, :Vd], attn_p[:, :, :V]


def _reference(text_feature, multiview_feature, w_text, b_text, w_vis, b_vis):
    tf = jnp.einsum('bld,dg->blg', text_feature, w_text) + b_text
    mf = jnp.einsum('bvd,dg->bvg', multiview_feature, w_vis) + b_vis
    scores = jnp.einsum('blf,bvf->blv', tf, mf)
    attn = jax.nn.softmax(scores, axis=-1)
    fusion = jnp.einsum('blv,bvf->blf', attn, multiview_feature)
    return fusion, attn


if __name__ == "__main__":
    # cfg: text_dim=32, visualcnn_dim=16, vtalign_ground_dim=32
    B, L, V = 2, 8, 4
    TEXT_DIM, VIS_DIM, GROUND_DIM = 32, 16, 32

    key = jax.random.PRNGKey(0)
    k1, k2, k3, k4, k5, k6 = jax.random.split(key, 6)

    text_feature = jax.random.normal(k1, (B, L, TEXT_DIM), dtype=jnp.float32)
    multiview_feature = jax.random.normal(k2, (B, V, VIS_DIM), dtype=jnp.float32)

    # Deterministic synthetic parameters (nn.Linear weights stored as (in, out)).
    w_text = jax.random.normal(k3, (TEXT_DIM, GROUND_DIM), dtype=jnp.float32) * 0.1
    b_text = jax.random.normal(k4, (GROUND_DIM,), dtype=jnp.float32) * 0.1
    w_vis = jax.random.normal(k5, (VIS_DIM, GROUND_DIM), dtype=jnp.float32) * 0.1
    b_vis = jax.random.normal(k6, (GROUND_DIM,), dtype=jnp.float32) * 0.1

    fusion, attn = multiview_attention(
        text_feature, multiview_feature, w_text, b_text, w_vis, b_vis)
    jax.block_until_ready(fusion)
    jax.block_until_ready(attn)

    ref_fusion, ref_attn = _reference(
        text_feature, multiview_feature, w_text, b_text, w_vis, b_vis)
    # Tolerance covers the approximate EUP reciprocal and the algebraically
    # refactored (but mathematically identical) score computation.
    assert jnp.allclose(fusion, ref_fusion, atol=5e-3, rtol=5e-3), \
        float(jnp.max(jnp.abs(fusion - ref_fusion)))
    assert jnp.allclose(attn, ref_attn, atol=5e-3, rtol=5e-3), \
        float(jnp.max(jnp.abs(attn - ref_attn)))
    assert fusion.shape == (B, L, VIS_DIM) and attn.shape == (B, L, V)

    print("KERNEL_OK")
</pallas_src>

<mosaic_0001>
module attributes {stable_mosaic.version = 11 : i64} {
  func.func @_mva_kernel(%arg0: i32, %arg1: memref<1x8x32xf32, #tpu.memory_space<vmem>>, %arg2: memref<1x128x128xf32, #tpu.memory_space<vmem>>, %arg3: memref<32x128xf32, #tpu.memory_space<vmem>>, %arg4: memref<1x128xf32, #tpu.memory_space<vmem>>, %arg5: memref<1x8x128xf32, #tpu.memory_space<vmem>>, %arg6: memref<1x8x128xf32, #tpu.memory_space<vmem>>) attributes {dimension_semantics = [#tpu.dimension_semantics<parallel>], iteration_bounds = array<i64: 2>, scalar_prefetch = 0 : i64, scratch_operands = 0 : i64, tpu.core_type = #tpu.core_type<tc>, window_params = [{transform_indices = @transform_0, window_bounds = array<i64: 1, 8, 32>}, {transform_indices = @transform_1, window_bounds = array<i64: 1, 128, 128>}, {pipeline_mode = #tpu.pipeline_mode<synchronous>, transform_indices = @transform_2, window_bounds = array<i64: 32, 128>}, {pipeline_mode = #tpu.pipeline_mode<synchronous>, transform_indices = @transform_3, window_bounds = array<i64: 1, 128>}, {transform_indices = @transform_4, window_bounds = array<i64: 1, 8, 128>}, {transform_indices = @transform_5, window_bounds = array<i64: 1, 8, 128>}]} {
    %c0 = arith.constant 0 : index
    %c0_0 = arith.constant 0 : index
    %c0_1 = arith.constant 0 : index
    %0 = vector.load %arg1[%c0, %c0_0, %c0_1] : memref<1x8x32xf32, #tpu.memory_space<vmem>>, vector<1x8x32xf32>
    %c0_2 = arith.constant 0 : index
    %c0_3 = arith.constant 0 : index
    %c0_4 = arith.constant 0 : index
    %1 = vector.load %arg2[%c0_2, %c0_3, %c0_4] : memref<1x128x128xf32, #tpu.memory_space<vmem>>, vector<1x128x128xf32>
    %c0_5 = arith.constant 0 : index
    %c0_6 = arith.constant 0 : index
    %2 = vector.load %arg3[%c0_5, %c0_6] : memref<32x128xf32, #tpu.memory_space<vmem>>, vector<32x128xf32>
    %cst = arith.constant dense<0.000000e+00> : vector<1x8x128xf32>
    %3 = tpu.matmul %0, %2, %cst {dimension_numbers = #tpu.dot_dimension_numbers<[2], [0], [0, 1], [1], [0, 0, 0, 1, 1, 1], [], []>} : vector<1x8x32xf32>, vector<32x128xf32>, vector<1x8x128xf32> -> vector<1x8x128xf32>
    %cst_7 = arith.constant dense<0.000000e+00> : vector<1x8x128xf32>
    %4 = tpu.matmul %3, %1, %cst_7 {dimension_numbers = #tpu.dot_dimension_numbers<[2], [2], [1], [1], [0, 0, 0, 1, 1, 1], [0], [0]>} : vector<1x8x128xf32>, vector<1x128x128xf32>, vector<1x8x128xf32> -> vector<1x8x128xf32>
    %c0_8 = arith.constant 0 : index
    %c0_9 = arith.constant 0 : index
    %5 = vector.load %arg4[%c0_8, %c0_9] : memref<1x128xf32, #tpu.memory_space<vmem>>, vector<1x128xf32>
    %6 = vector.shape_cast %5 : vector<1x128xf32> to vector<1x1x128xf32>
    %7 = vector.broadcast %6 : vector<1x1x128xf32> to vector<1x128x128xf32>
    %8 = arith.mulf %1, %7 : vector<1x128x128xf32>
    %cst_10 = arith.constant dense<0.000000e+00> : vector<1x128xf32>
    %9 = vector.multi_reduction <add>, %8, %cst_10 [2] : vector<1x128x128xf32> to vector<1x128xf32>
    %10 = vector.shape_cast %9 : vector<1x128xf32> to vector<1x1x128xf32>
    %11 = vector.broadcast %10 : vector<1x1x128xf32> to vector<1x8x128xf32>
    %12 = arith.addf %4, %11 : vector<1x8x128xf32>
    %13 = tpu.iota {dimensions = array<i32: 2>} : vector<1x8x128xi32>
    %c4_i32 = arith.constant 4 : i32
    %14 = vector.broadcast %c4_i32 : i32 to vector<1x8x128xi32>
    %15 = arith.cmpi slt, %13, %14 : vector<1x8x128xi32>
    %cst_11 = arith.constant -1.000000e+30 : f32
    %16 = vector.broadcast %cst_11 : f32 to vector<1x8x128xf32>
    %17 = arith.select %15, %12, %16 : vector<1x8x128xi1>, vector<1x8x128xf32>
    %cst_12 = arith.constant dense<0xFF800000> : vector<1x8xf32>
    %18 = vector.multi_reduction <maximumf>, %17, %cst_12 [2] : vector<1x8x128xf32> to vector<1x8xf32>
    %19 = vector.shape_cast %18 : vector<1x8xf32> to vector<1x8x1xf32>
    %20 = vector.broadcast %19 : vector<1x8x1xf32> to vector<1x8x128xf32>
    %21 = arith.subf %17, %20 : vector<1x8x128xf32>
    %22 = math.exp %21 : vector<1x8x128xf32>
    %cst_13 = arith.constant dense<0.000000e+00> : vector<1x8xf32>
    %23 = vector.multi_reduction <add>, %22, %cst_13 [2] : vector<1x8x128xf32> to vector<1x8xf32>
    %24 = vector.shape_cast %23 : vector<1x8xf32> to vector<1x8x1xf32>
    %25 = tpu.reciprocal %24 {approx = true} : vector<1x8x1xf32> -> vector<1x8x1xf32>
    %26 = vector.broadcast %25 : vector<1x8x1xf32> to vector<1x8x128xf32>
    %27 = arith.mulf %22, %26 : vector<1x8x128xf32>
    %cst_14 = arith.constant dense<0.000000e+00> : vector<1x8x128xf32>
    %28 = tpu.matmul %27, %1, %cst_14 {dimension_numbers = #tpu.dot_dimension_numbers<[2], [1], [1], [2], [0, 0, 0, 1, 1, 2], [0], [0]>} : vector<1x8x128xf32>, vector<1x128x128xf32>, vector<1x8x128xf32> -> vector<1x8x128xf32>
    %c0_15 = arith.constant 0 : index
    %c0_16 = arith.constant 0 : index
    %c0_17 = arith.constant 0 : index
    %29 = vector.load %arg5[%c0_15, %c0_16, %c0_17] : memref<1x8x128xf32, #tpu.memory_space<vmem>>, vector<1x8x128xf32>
    tpu.vector_store %arg5[%c0_15, %c0_16, %c0_17], %28 {strides = array<i32>} : memref<1x8x128xf32, #tpu.memory_space<vmem>>, vector<1x8x128xf32>,
    %c0_18 = arith.constant 0 : index
    %c0_19 = arith.constant 0 : index
    %c0_20 = arith.constant 0 : index
    %30 = vector.load %arg6[%c0_18, %c0_19, %c0_20] : memref<1x8x128xf32, #tpu.memory_space<vmem>>, vector<1x8x128xf32>
    tpu.vector_store %arg6[%c0_18, %c0_19, %c0_20], %27 {strides = array<i32>} : memref<1x8x128xf32, #tpu.memory_space<vmem>>, vector<1x8x128xf32>,
    return
  }
  func.func @transform_0(%arg0: i32) -> (i32, i32, i32) {
    %c0_i32 = arith.constant 0 : i32
    %c0_i32_0 = arith.constant 0 : i32
    %c0_i32_1 = arith.constant 0 : i32
    return %arg0, %c0_i32, %c0_i32_0 : i32, i32, i32
  }
  func.func @transform_1(%arg0: i32) -> (i32, i32, i32) {
    %c0_i32 = arith.constant 0 : i32
    %c0_i32_0 = arith.constant 0 : i32
    %c0_i32_1 = arith.constant 0 : i32
    return %arg0, %c0_i32, %c0_i32_0 : i32, i32, i32
  }
  func.func @transform_2(%arg0: i32) -> (i32, i32) {
    %c0_i32 = arith.constant 0 : i32
    %c0_i32_0 = arith.constant 0 : i32
    %c0_i32_1 = arith.constant 0 : i32
    return %c0_i32, %c0_i32_0 : i32, i32
  }
  func.func @transform_3(%arg0: i32) -> (i32, i32) {
    %c0_i32 = arith.constant 0 : i32
    %c0_i32_0 = arith.constant 0 : i32
    %c0_i32_1 = arith.constant 0 : i32
    return %c0_i32, %c0_i32_0 : i32, i32
  }
  func.func @transform_4(%arg0: i32) -> (i32, i32, i32) {
    %c0_i32 = arith.constant 0 : i32
    %c0_i32_0 = arith.constant 0 : i32
    %c0_i32_1 = arith.constant 0 : i32
    return %arg0, %c0_i32, %c0_i32_0 : i32, i32, i32
  }
  func.func @transform_5(%arg0: i32) -> (i32, i32, i32) {
    %c0_i32 = arith.constant 0 : i32
    %c0_i32_0 = arith.constant 0 : i32
    %c0_i32_1 = arith.constant 0 : i32
    return %arg0, %c0_i32, %c0_i32_0 : i32, i32, i32
  }
}

</mosaic_0001>

<llo_original>
// kernel: tpu_custom_call.1
$region0: #{tpu_custom_call.1}
  #allocation0 [shape = 'u32[]', space=smem, size = 0x4, offset = 0x4, fixed_abs, tag = 'smem constant byte address 0x4 - core index']
  #allocation1 [shape = 'u32[144,128]{1,0:T(1,128)}', space=vmem, size = 0x12000, scoped, tag = 'internal scratch']
  %s0 = inlined_call_operand.hbm [shape: f32[2,8,32], index: 0, kind: input, shape index: {}]
  %s1 = inlined_call_operand.hbm [shape: f32[2,128,128], index: 1, kind: input, shape index: {}]
  %s2 = inlined_call_operand.hbm [shape: f32[32,128], index: 2, kind: input, shape index: {}]
  %s3 = inlined_call_operand.vmem [shape: f32[1,128], index: 3, kind: input, shape index: {}]
  %s4 = inlined_call_operand.hbm [shape: f32[2,8,128], index: 4, kind: output, shape index: {0}]
  %s5 = inlined_call_operand.hbm [shape: f32[2,8,128], index: 5, kind: output, shape index: {1}]
  %6 = xla_tuple %s4, %s5
  %s7 = sld [smem:[#allocation0]]
  $region69: #{tpu_custom_call.1} parent=0
    _
  %s9 = ssub.s32 1, %s7
  %s10 = scalar_select 0, %s9, %s7
  $region1: #{tpu_custom_call.1} parent=0
    #allocation2 [shape = 'u8[8192]{0}', space=vmem, size = 0x2000, scoped, tag = 'input window, operand 0']
    #allocation3 [shape = 's32[2]{0}', space=sflag, size = 0x8, scoped, tag = 'scoped memory for tpu_custom_call.1']
    #allocation4 [shape = 's32[2]{0}', space=sflag, size = 0x8, scoped, tag = 'scoped memory for tpu_custom_call.1']
    #allocation5 [shape = 'u8[131072]{0}', space=vmem, size = 0x20000, scoped, tag = 'input window, operand 1']
    #allocation6 [shape = 's32[2]{0}', space=sflag, size = 0x8, scoped, tag = 'scoped memory for tpu_custom_call.1']
    #allocation7 [shape = 'u8[16384]{0}', space=vmem, size = 0x4000, scoped, tag = 'input window, operand 2, single buffered']
    #allocation8 [shape = 'u8[8192]{0}', space=vmem, size = 0x2000, scoped, tag = 'output window, operand 0']
    #allocation9 [shape = 'u8[8192]{0}', space=vmem, size = 0x2000, scoped, tag = 'output window, operand 1']
    #allocation10 [shape = 's32[2]{0}', space=sflag, size = 0x8, scoped, tag = 'scoped memory for tpu_custom_call.1']
    %11 = vsyncpa [#allocation3], 0
    %s12 = scalar_lea.sflag [#allocation3], 1
    %13 = vsyncpa %s12, 0
    %14 = vsyncpa [#allocation6], 0
    %s15 = scalar_lea.sflag [#allocation6], 1
    %16 = vsyncpa %s15, 0
    %17 = vsyncpa [#allocation4], 0
    %s18 = scalar_lea.sflag [#allocation4], 1
    %19 = vsyncpa %s18, 0
    %20 = vsyncpa [#allocation10], 0
    %s21 = scalar_lea.sflag [#allocation10], 1
    %22 = vsyncpa %s21, 0
    loop: start=0, step=1, limit=4
    $region2: #{tpu_custom_call.1} parent=1 // loop_pre_header
      _
    $region3: #{tpu_custom_call.1} parent=1 // loop_header
      %s24 = sphi 0, %s28
      %p25 = scmp.ge.s32.totalorder %s24, 4
      %s34 = sphi 0, %s36
      %s37 = sphi 0, %s34
      %s38 = sphi 0, %s37
      %s54 = sphi 0, %s38
      %s60 = sphi 0, %s62
      %s63 = sphi 0, %s60
      %s64 = sphi 0, %s63
      %s80 = sphi 0, %s64
      %s84 = sphi 0, %s84
      %s86 = sphi 0, %s84
      %s87 = sphi 0, %s86
      %s101 = sphi 0, %s87
      %s105 = sphi 0, %s105
      %s107 = sphi 0, %s105
      %s108 = sphi 0, %s107
      %s122 = sphi 0, %s108
      %s128 = sphi 0, %s130
      %s131 = sphi 0, %s128
      %s132 = sphi 0, %s131
      %s148 = sphi 0, %s132
      %s154 = sphi 0, %s156
      %s157 = sphi 0, %s154
      %s158 = sphi 0, %s157
      %s174 = sphi 0, %s158
    $region4: #{tpu_custom_call.1} parent=1 // loop_header_branch
      %27 = sbr.rel (%p25) target = $region8
    $region5: #{tpu_custom_call.1} parent=1 // loop_body
      %s29 = ssub.s32 %s24, 1
      %s30 = ssub.s32 %s24, 2
      %s31 = sadd.s32 %s24, 1
      %s32 = ssub.s32 %s24, %s31
      %p33 = scmp.eq.s32.totalorder %s32, 0
      %s35 = sadd.s32 %s34, 1
      %s36 = scalar_select %p33, %s34, %s35
      %p39 = pneg %p33
      %p40 = scmp.eq.s32.totalorder %s24, 1
      %p41 = por %p39, %p40
      %p42 = scmp.ne.s32.totalorder %s34, %s37
      %p43 = scmp.eq.s32.totalorder %s24, 0
      %p44 = por %p42, %p43
      %p45 = scmp.ne.s32.totalorder %s34, %s37
      %p46 = scmp.eq.s32.totalorder %s29, 1
      %p47 = por %p45, %p46
      %p48 = scmp.ne.s32.totalorder %s37, %s38
      %p49 = scmp.eq.s32.totalorder %s29, 0
      %p50 = por %p48, %p49
      %p51 = scmp.ne.s32.totalorder %s37, %s38
      %p52 = scmp.eq.s32.totalorder %s30, 1
      %p53 = por %p51, %p52
      %p55 = scmp.ne.s32.totalorder %s38, %s54
      %p56 = scmp.eq.s32.totalorder %s30, 0
      %p57 = por %p55, %p56
      %s58 = ssub.s32 %s24, %s31
      %p59 = scmp.eq.s32.totalorder %s58, 0
      %s61 = sadd.s32 %s60, 1
      %s62 = scalar_select %p59, %s60, %s61
      %p65 = pneg %p59
      %p66 = scmp.eq.s32.totalorder %s24, 1
      %p67 = por %p65, %p66
      %p68 = scmp.ne.s32.totalorder %s60, %s63
      %p69 = scmp.eq.s32.totalorder %s24, 0
      %p70 = por %p68, %p69
      %p71 = scmp.ne.s32.totalorder %s60, %s63
      %p72 = scmp.eq.s32.totalorder %s29, 1
      %p73 = por %p71, %p72
      %p74 = scmp.ne.s32.totalorder %s63, %s64
      %p75 = scmp.eq.s32.totalorder %s29, 0
      %p76 = por %p74, %p75
      %p77 = scmp.ne.s32.totalorder %s63, %s64
      %p78 = scmp.eq.s32.totalorder %s30, 1
      %p79 = por %p77, %p78
      %p81 = scmp.ne.s32.totalorder %s64, %s80
      %p82 = scmp.eq.s32.totalorder %s30, 0
      %p83 = por %p81, %p82
      %s85 = sadd.s32 %s84, 1
      %p88 = scmp.eq.s32.totalorder %s24, 1
      %p89 = scmp.ne.s32.totalorder %s84, %s86
      %p90 = scmp.eq.s32.totalorder %s24, 0
      %p91 = por %p89, %p90
      %p92 = scmp.ne.s32.totalorder %s84, %s86
      %p93 = scmp.eq.s32.totalorder %s29, 1
      %p94 = por %p92, %p93
      %p95 = scmp.ne.s32.totalorder %s86, %s87
      %p96 = scmp.eq.s32.totalorder %s29, 0
      %p97 = por %p95, %p96
      %p98 = scmp.ne.s32.totalorder %s86, %s87
      %p99 = scmp.eq.s32.totalorder %s30, 1
      %p100 = por %p98, %p99
      %p102 = scmp.ne.s32.totalorder %s87, %s101
      %p103 = scmp.eq.s32.totalorder %s30, 0
      %p104 = por %p102, %p103
      %s106 = sadd.s32 %s105, 1
      %p109 = scmp.eq.s32.totalorder %s24, 1
      %p110 = scmp.ne.s32.totalorder %s105, %s107
      %p111 = scmp.eq.s32.totalorder %s24, 0
      %p112 = por %p110, %p111
      %p113 = scmp.ne.s32.totalorder %s105, %s107
      %p114 = scmp.eq.s32.totalorder %s29, 1
      %p115 = por %p113, %p114
      %p116 = scmp.ne.s32.totalorder %s107, %s108
      %p117 = scmp.eq.s32.totalorder %s29, 0
      %p118 = por %p116, %p117
      %p119 = scmp.ne.s32.totalorder %s107, %s108
      %p120 = scmp.eq.s32.totalorder %s30, 1
      %p121 = por %p119, %p120
      %p123 = scmp.ne.s32.totalorder %s108, %s122
      %p124 = scmp.eq.s32.totalorder %s30, 0
      %p125 = por %p123, %p124
      %s126 = ssub.s32 %s24, %s31
      %p127 = scmp.eq.s32.totalorder %s126, 0
      %s129 = sadd.s32 %s128, 1
      %s130 = scalar_select %p127, %s128, %s129
      %p133 = pneg %p127
      %p134 = scmp.eq.s32.totalorder %s24, 1
      %p135 = por %p133, %p134
      %p136 = scmp.ne.s32.totalorder %s128, %s131
      %p137 = scmp.eq.s32.totalorder %s24, 0
      %p138 = por %p136, %p137
      %p139 = scmp.ne.s32.totalorder %s128, %s131
      %p140 = scmp.eq.s32.totalorder %s29, 1
      %p141 = por %p139, %p140
      %p142 = scmp.ne.s32.totalorder %s131, %s132
      %p143 = scmp.eq.s32.totalorder %s29, 0
      %p144 = por %p142, %p143
      %p145 = scmp.ne.s32.totalorder %s131, %s132
      %p146 = scmp.eq.s32.totalorder %s30, 1
      %p147 = por %p145, %p146
      %p149 = scmp.ne.s32.totalorder %s132, %s148
      %p150 = scmp.eq.s32.totalorder %s30, 0
      %p151 = por %p149, %p150
      %s152 = ssub.s32 %s24, %s31
      %p153 = scmp.eq.s32.totalorder %s152, 0
      %s155 = sadd.s32 %s154, 1
      %s156 = scalar_select %p153, %s154, %s155
      %p159 = pneg %p153
      %p160 = scmp.eq.s32.totalorder %s24, 1
      %p161 = por %p159, %p160
      %p162 = scmp.ne.s32.totalorder %s154, %s157
      %p163 = scmp.eq.s32.totalorder %s24, 0
      %p164 = por %p162, %p163
      %p165 = scmp.ne.s32.totalorder %s154, %s157
      %p166 = scmp.eq.s32.totalorder %s29, 1
      %p167 = por %p165, %p166
      %p168 = scmp.ne.s32.totalorder %s157, %s158
      %p169 = scmp.eq.s32.totalorder %s29, 0
      %p170 = por %p168, %p169
      %p171 = scmp.ne.s32.totalorder %s157, %s158
      %p172 = scmp.eq.s32.totalorder %s30, 1
      %p173 = por %p171, %p172
      %p175 = scmp.ne.s32.totalorder %s158, %s174
      %p176 = scmp.eq.s32.totalorder %s30, 0
      %p177 = por %p175, %p176
      %p178 = scmp.le.s32.totalorder 1, %s24
      %p179 = scmp.lt.s32.totalorder %s24, 3
      %p180 = pnand %p178, %p179
      %p181 = pneg %p180
      // Predicated region
      $region9: #{tpu_custom_call.1} parent=5 // pred_check
        _
      $region10: #{tpu_custom_call.1} parent=5 // pred_check_branch
        %183 = sbr.rel (%p180) target = $region12
      $region11: #{tpu_custom_call.1} parent=5 // pred_region
        %s184 = ssub.s32 %s24, 1
        // Predicated region
        $region13: #{tpu_custom_call.1} parent=11 // pred_check
          %p185 = pneg %p97
        $region14: #{tpu_custom_call.1} parent=11 // pred_check_branch
          %187 = sbr.rel (%p185) target = $region16
        $region15: #{tpu_custom_call.1} parent=11 // pred_region
          %s189 = ssub.s32 512, 512
          %190 = vsyncadd [#allocation6], %s189
          %s191 = sshll.u32 [#allocation7], 4
          %s192 = int_to_ptr.vmem [resolvable:$true] %s191
          %197 = dma.hbm_to_vmem [thread:$0]  %s2, 512, %s192, [#allocation6], 128, 128, 8
        $region16: #{tpu_custom_call.1} parent=11 // pred_fallthru
          _
        // Predicated region
        $region17: #{tpu_custom_call.1} parent=11 // pred_check
          %p198 = pneg %p118
        $region18: #{tpu_custom_call.1} parent=11 // pred_check_branch
          %200 = sbr.rel (%p198) target = $region20
        $region19: #{tpu_custom_call.1} parent=11 // pred_region
          _
        $region20: #{tpu_custom_call.1} parent=11 // pred_fallthru
          _
      $region12: #{tpu_custom_call.1} parent=5 // pred_fallthru
        _
      %p201 = scmp.lt.s32.totalorder %s24, 2
      // Predicated region
      $region21: #{tpu_custom_call.1} parent=5 // pred_check
        %p202 = pneg %p201
      $region22: #{tpu_custom_call.1} parent=5 // pred_check_branch
        %204 = sbr.rel (%p202) target = $region24
      $region23: #{tpu_custom_call.1} parent=5 // pred_region
        // Predicated region
        $region25: #{tpu_custom_call.1} parent=23 // pred_check
          %p205 = pneg %p44
        $region26: #{tpu_custom_call.1} parent=23 // pred_check_branch
          %207 = sbr.rel (%p205) target = $region28
        $region27: #{tpu_custom_call.1} parent=23 // pred_region
          %s208 = sand.u32 %s34, 1
          %s209 = scalar_lea.sflag [#allocation3], %s208
          %s210 = sand.u32 %s34, 1
          %s211 = smul.addr %s210, 8
          %s212 = scalar_lea.vmem [#allocation2], %s211
          %s214 = ssub.s32 128, 128
          %215 = vsyncadd %s209, %s214
          %s216 = smul.addr %s24, 128
          %s217 = scalar_lea.hbm %s0, %s216
          %s219 = sshll.u32 %s212, 4
          %s220 = int_to_ptr.vmem [resolvable:$true] %s219
          %222 = dma.hbm_to_vmem [thread:$0]  %s217, 128, %s220, %s209
        $region28: #{tpu_custom_call.1} parent=23 // pred_fallthru
          _
        // Predicated region
        $region29: #{tpu_custom_call.1} parent=23 // pred_check
          %p223 = pneg %p70
        $region30: #{tpu_custom_call.1} parent=23 // pred_check_branch
          %225 = sbr.rel (%p223) target = $region32
        $region31: #{tpu_custom_call.1} parent=23 // pred_region
          %s226 = sand.u32 %s24, 1
          %s227 = scalar_lea.sflag [#allocation6], %s226
          %s228 = sand.u32 %s60, 1
          %s229 = smul.addr %s228, 128
          %s230 = scalar_lea.vmem [#allocation5], %s229
          %s232 = ssub.s32 2048, 2048
          %233 = vsyncadd %s227, %s232
          %s234 = smul.addr %s24, 16
          %s235 = smul.addr %s234, 128
          %s236 = scalar_lea.hbm %s1, %s235
          %s237 = sshll.u32 %s230, 4
          %s238 = int_to_ptr.vmem [resolvable:$true] %s237
          %243 = dma.hbm_to_vmem [thread:$0]  %s236, 2048, %s238, %s227, 128, 128, 8
        $region32: #{tpu_custom_call.1} parent=23 // pred_fallthru
          _
      $region24: #{tpu_custom_call.1} parent=5 // pred_fallthru
        _
      %p244 = scmp.le.s32.totalorder 1, %s24
      %p245 = scmp.lt.s32.totalorder %s24, 3
      %p246 = pnand %p244, %p245
      %p247 = pneg %p246
      // Predicated region
      $region33: #{tpu_custom_call.1} parent=5 // pred_check
        _
      $region34: #{tpu_custom_call.1} parent=5 // pred_check_branch
        %249 = sbr.rel (%p246) target = $region36
      $region35: #{tpu_custom_call.1} parent=5 // pred_region
        %s250 = ssub.s32 %s24, 1
        %s251 = sand.u32 %s37, 1
        %s252 = scalar_lea.sflag [#allocation3], %s251
        %s253 = sand.u32 %s37, 1
        %s254 = smul.addr %s253, 8
        %s255 = scalar_lea.vmem [#allocation2], %s254
        // Predicated region
        $region37: #{tpu_custom_call.1} parent=35 // pred_check
          %p256 = pneg %p50
        $region38: #{tpu_custom_call.1} parent=35 // pred_check_branch
          %258 = sbr.rel (%p256) target = $region40
        $region39: #{tpu_custom_call.1} parent=35 // pred_region
          %259 = dma.done %s252, 128
        $region40: #{tpu_custom_call.1} parent=35 // pred_fallthru
          _
        %s260 = sand.u32 %s29, 1
        %s261 = scalar_lea.sflag [#allocation6], %s260
        %s262 = sand.u32 %s63, 1
        %s263 = smul.addr %s262, 128
        %s264 = scalar_lea.vmem [#allocation5], %s263
        // Predicated region
        $region41: #{tpu_custom_call.1} parent=35 // pred_check
          %p265 = pneg %p76
        $region42: #{tpu_custom_call.1} parent=35 // pred_check_branch
          %267 = sbr.rel (%p265) target = $region44
        $region43: #{tpu_custom_call.1} parent=35 // pred_region
          %268 = dma.done %s261, 2048
        $region44: #{tpu_custom_call.1} parent=35 // pred_fallthru
          _
        // Predicated region
        $region45: #{tpu_custom_call.1} parent=35 // pred_check
          %p269 = pneg %p97
        $region46: #{tpu_custom_call.1} parent=35 // pred_check_branch
          %271 = sbr.rel (%p269) target = $region48
        $region47: #{tpu_custom_call.1} parent=35 // pred_region
          %272 = dma.done [#allocation6], 512
        $region48: #{tpu_custom_call.1} parent=35 // pred_fallthru
          _
        %s273 = sand.u32 %s37, 1
        %s274 = scalar_lea.sflag [#allocation3], %s273
        %s275 = sand.u32 %s37, 1
        %s276 = smul.addr %s275, 8
        %s277 = scalar_lea.vmem [#allocation2], %s276
        %p278 = pneg %p50
        %p279 = pneg %p47
        %s280 = sand.u32 %s29, 1
        %s281 = scalar_lea.sflag [#allocation6], %s280
        %s282 = sand.u32 %s63, 1
        %s283 = smul.addr %s282, 128
        %s284 = scalar_lea.vmem [#allocation5], %s283
        %p285 = pneg %p76
        %p286 = pneg %p73
        %p287 = pneg %p97
        %p288 = pneg %p94
        %p289 = pneg %p118
        %p290 = pneg %p115
        %p291 = pneg %p144
        %p292 = pneg %p141
        %s293 = sand.u32 %s131, 1
        %s294 = scalar_lea.sflag [#allocation4], %s293
        %s295 = sand.u32 %s131, 1
        %s296 = smul.addr %s295, 8
        %s297 = scalar_lea.vmem [#allocation8], %s296
        %p298 = pneg %p170
        %p299 = pneg %p167
        %s300 = sand.u32 %s157, 1
        %s301 = scalar_lea.sflag [#allocation10], %s300
        %s302 = sand.u32 %s157, 1
        %s303 = smul.addr %s302, 8
        %s304 = scalar_lea.vmem [#allocation9], %s303
        %v305 = vld [vmem:[%s255] sm:$0xff]
        %v306 = vld [vmem:[%s264] sm:$0xff]
        %v307 = vld [vmem:[%s264 + $0x8] sm:$0xff]
        %v308 = vld [vmem:[%s264 + $0x10] sm:$0xff]
        %v309 = vld [vmem:[%s264 + $0x18] sm:$0xff]
        %v310 = vld [vmem:[%s264 + $0x20] sm:$0xff]
        %v311 = vld [vmem:[%s264 + $0x28] sm:$0xff]
        %v312 = vld [vmem:[%s264 + $0x30] sm:$0xff]
        %v313 = vld [vmem:[%s264 + $0x38] sm:$0xff]
        %v314 = vld [vmem:[%s264 + $0x40] sm:$0xff]
        %v315 = vld [vmem:[%s264 + $0x48] sm:$0xff]
        %v316 = vld [vmem:[%s264 + $0x50] sm:$0xff]
        %v317 = vld [vmem:[%s264 + $0x58] sm:$0xff]
        %v318 = vld [vmem:[%s264 + $0x60] sm:$0xff]
        %v319 = vld [vmem:[%s264 + $0x68] sm:$0xff]
        %v320 = vld [vmem:[%s264 + $0x70] sm:$0xff]
        %v321 = vld [vmem:[%s264 + $0x78] sm:$0xff]
        %v322 = vld [vmem:[#allocation7] sm:$0xff]
        %v323 = vld [vmem:[#allocation7 + $0x8] sm:$0xff]
        %v324 = vld [vmem:[#allocation7 + $0x10] sm:$0xff]
        %v325 = vld [vmem:[#allocation7 + $0x18] sm:$0xff]
        %vm326 = vcmask 261120
        %v328 = vsel %vm326, %v305, 0
        %330 = vmatprep.subr.mxu0 0.0
        %331 = vmatpush1.msra.mxu0 %v322
        %332 = vmatprep.subr.mxu0 0.0
        %333 = vmatpush1.msra.mxu0 %v323
        %334 = vmatprep.subr.mxu0 0.0
        %335 = vmatpush1.msra.mxu0 %v324
        %336 = vmatprep.subr.mxu0 0.0
        %337 = vmatpush1.msra.mxu0 %v325
        %338 = vmatprep.subr.mxu0 0.0
        %339 = vmatpush1.msra.mxu0 0.0
        %340 = vmatprep.subr.mxu0 0.0
        %341 = vmatpush1.msra.mxu0 0.0
        %342 = vmatprep.subr.mxu0 0.0
        %343 = vmatpush1.msra.mxu0 0.0
        %344 = vmatprep.subr.mxu0 0.0
        %345 = vmatpush1.msra.mxu0 0.0
        %346 = vmatprep.subr.mxu0 0.0
        %347 = vmatpush1.msra.mxu0 0.0
        %348 = vmatprep.subr.mxu0 0.0
        %349 = vmatpush1.msra.mxu0 0.0
        %350 = vmatprep.subr.mxu0 0.0
        %351 = vmatpush1.msra.mxu0 0.0
        %352 = vmatprep.subr.mxu0 0.0
        %353 = vmatpush1.msra.mxu0 0.0
        %354 = vmatprep.subr.mxu0 0.0
        %355 = vmatpush1.msra.mxu0 0.0
        %356 = vmatprep.subr.mxu0 0.0
        %357 = vmatpush1.msra.mxu0 0.0
        %358 = vmatprep.subr.mxu0 0.0
        %359 = vmatpush1.msra.mxu0 0.0
        %360 = vmatprep.subr.mxu0 0.0
        %361 = vmatpush1.msra.mxu0 0.0
        %362 = vmatprep.subr.mxu0 0.0
        %363 = vmatpush1.msra.mxu0 0.0
        %364 = vmatprep.subr.mxu0 0.0
        %365 = vmatpush1.msra.mxu0 0.0
        %366 = vmatprep.subr.mxu0 0.0
        %367 = vmatpush1.msra.mxu0 0.0
        %368 = vmatprep.subr.mxu0 0.0
        %369 = vmatpush1.msra.mxu0 0.0
        %370 = vmatprep.subr.mxu0 0.0
        %371 = vmatpush1.msra.mxu0 0.0
        %372 = vmatprep.subr.mxu0 0.0
        %373 = vmatpush1.msra.mxu0 0.0
        %374 = vmatprep.subr.mxu0 0.0
        %375 = vmatpush1.msra.mxu0 0.0
        %376 = vmatprep.subr.mxu0 0.0
        %377 = vmatpush1.msra.mxu0 0.0
        %378 = vmatprep.subr.mxu0 0.0
        %379 = vmatpush1.msra.mxu0 0.0
        %380 = vmatprep.subr.mxu0 0.0
        %381 = vmatpush1.msra.mxu0 0.0
        %382 = vmatprep.subr.mxu0 0.0
        %383 = vmatpush1.msra.mxu0 0.0
        %384 = vmatprep.subr.mxu0 0.0
        %385 = vmatpush1.msra.mxu0 0.0
        %386 = vmatprep.subr.mxu0 0.0
        %387 = vmatpush1.msra.mxu0 0.0
        %388 = vmatprep.subr.mxu0 0.0
        %389 = vmatpush1.msra.mxu0 0.0
        %390 = vmatprep.subr.mxu0 0.0
        %391 = vmatpush1.msra.mxu0 0.0
        %392 = vmatprep.subr.mxu0 0.0
        %393 = vmatpush1.msra.mxu0 0.0
        %394 = vmatprep.mubr.f32.mxu0 0.0
        %395 = vmatmul.mubr.f32.gmra.mrb[0].mxu0 %v328
        %v396 = vpop.f32.mrb[0].mxu0
        %v397 = vadd.f32 0.0, %v396
        %v398 = vpop.f32.mrb[0].mxu0
        %399 = vdwg.mxu0
        %v400 = vld [vmem:[%s3] sm:$0x1]
        %v402 = vlaneseq
        %v403 = vshrl.u32 %v402, 7
        %v404 = vsub.s32 0, %v403
        %v405 = vrot.slane %v400, %v404
        %v407 = vmul.f32 %v306, %v405
        %v408 = vmul.f32 %v307, %v405
        %v409 = vmul.f32 %v308, %v405
        %v410 = vmul.f32 %v309, %v405
        %v411 = vmul.f32 %v310, %v405
        %v412 = vmul.f32 %v311, %v405
        %v413 = vmul.f32 %v312, %v405
        %v414 = vmul.f32 %v313, %v405
        %v415 = vmul.f32 %v314, %v405
        %v416 = vmul.f32 %v315, %v405
        %v417 = vmul.f32 %v316, %v405
        %v418 = vmul.f32 %v317, %v405
        %v419 = vmul.f32 %v318, %v405
        %v420 = vmul.f32 %v319, %v405
        %v421 = vmul.f32 %v320, %v405
        %v422 = vmul.f32 %v321, %v405
        %423 = vadd.xlane.f32.xlu0 %v407
        %v424 = vpop.xlane.xlu0 %423
        %425 = vadd.xlane.f32.xlu0 %v408
        %v426 = vpop.xlane.xlu0 %425
        %427 = vadd.xlane.f32.xlu0 %v409
        %v428 = vpop.xlane.xlu0 %427
        %429 = vadd.xlane.f32.xlu0 %v410
        %v430 = vpop.xlane.xlu0 %429
        %431 = vadd.xlane.f32.xlu0 %v411
        %v432 = vpop.xlane.xlu0 %431
        %433 = vadd.xlane.f32.xlu0 %v412
        %v434 = vpop.xlane.xlu0 %433
        %435 = vadd.xlane.f32.xlu0 %v413
        %v436 = vpop.xlane.xlu0 %435
        %437 = vadd.xlane.f32.xlu0 %v414
        %v438 = vpop.xlane.xlu0 %437
        %439 = vadd.xlane.f32.xlu0 %v415
        %v440 = vpop.xlane.xlu0 %439
        %441 = vadd.xlane.f32.xlu0 %v416
        %v442 = vpop.xlane.xlu0 %441
        %443 = vadd.xlane.f32.xlu0 %v417
        %v444 = vpop.xlane.xlu0 %443
        %445 = vadd.xlane.f32.xlu0 %v418
        %v446 = vpop.xlane.xlu0 %445
        %447 = vadd.xlane.f32.xlu0 %v419
        %v448 = vpop.xlane.xlu0 %447
        %449 = vadd.xlane.f32.xlu0 %v420
        %v450 = vpop.xlane.xlu0 %449
        %451 = vadd.xlane.f32.xlu0 %v421
        %v452 = vpop.xlane.xlu0 %451
        %453 = vadd.xlane.f32.xlu0 %v422
        %v454 = vpop.xlane.xlu0 %453
        %v471 = vlaneseq
        %v472 = vand.u32 %v471, 127
        %v473 = vlaneseq
        %v474 = vshrl.u32 %v473, 7
        %v475 = vsub.s32 %v472, %v474
        %v476 = vrot.slane %v424, %v475
        %v477 = vadd.s32 %v472, 4294967288
        %v478 = vlaneseq
        %v479 = vshrl.u32 %v478, 7
        %v480 = vsub.s32 %v477, %v479
        %v481 = vrot.slane %v426, %v480
        %vm482 = vcmask 130112
        %v483 = vsel %vm482, %v481, %v476
        %v484 = vadd.s32 %v472, 4294967280
        %v485 = vlaneseq
        %v486 = vshrl.u32 %v485, 7
        %v487 = vsub.s32 %v484, %v486
        %v488 = vrot.slane %v428, %v487
        %vm489 = vcmask 195712
        %v490 = vsel %vm489, %v488, %v483
        %v491 = vadd.s32 %v472, 4294967272
        %v492 = vlaneseq
        %v493 = vshrl.u32 %v492, 7
        %v494 = vsub.s32 %v491, %v493
        %v495 = vrot.slane %v430, %v494
        %vm496 = vcmask 261312
        %v497 = vsel %vm496, %v495, %v490
        %v498 = vadd.s32 %v472, 4294967264
        %v499 = vlaneseq
        %v500 = vshrl.u32 %v499, 7
        %v501 = vsub.s32 %v498, %v500
        %v502 = vrot.slane %v432, %v501
        %vm503 = vcmask 326912
        %v504 = vsel %vm503, %v502, %v497
        %v505 = vadd.s32 %v472, 4294967256
        %v506 = vlaneseq
        %v507 = vshrl.u32 %v506, 7
        %v508 = vsub.s32 %v505, %v507
        %v509 = vrot.slane %v434, %v508
        %vm510 = vcmask 392512
        %v511 = vsel %vm510, %v509, %v504
        %v512 = vadd.s32 %v472, 4294967248
        %v513 = vlaneseq
        %v514 = vshrl.u32 %v513, 7
        %v515 = vsub.s32 %v512, %v514
        %v516 = vrot.slane %v436, %v515
        %vm517 = vcmask 458112
        %v518 = vsel %vm517, %v516, %v511
        %v519 = vadd.s32 %v472, 4294967240
        %v520 = vlaneseq
        %v521 = vshrl.u32 %v520, 7
        %v522 = vsub.s32 %v519, %v521
        %v523 = vrot.slane %v438, %v522
        %vm524 = vcmask 523712
        %v525 = vsel %vm524, %v523, %v518
        %v526 = vadd.s32 %v472, 4294967232
        %v527 = vlaneseq
        %v528 = vshrl.u32 %v527, 7
        %v529 = vsub.s32 %v526, %v528
        %v530 = vrot.slane %v440, %v529
        %vm531 = vcmask 589312
        %v532 = vsel %vm531, %v530, %v525
        %v533 = vadd.s32 %v472, 4294967224
        %v534 = vlaneseq
        %v535 = vshrl.u32 %v534, 7
        %v536 = vsub.s32 %v533, %v535
        %v537 = vrot.slane %v442, %v536
        %vm538 = vcmask 654912
        %v539 = vsel %vm538, %v537, %v532
        %v540 = vadd.s32 %v472, 4294967216
        %v541 = vlaneseq
        %v542 = vshrl.u32 %v541, 7
        %v543 = vsub.s32 %v540, %v542
        %v544 = vrot.slane %v444, %v543
        %vm545 = vcmask 720512
        %v546 = vsel %vm545, %v544, %v539
        %v547 = vadd.s32 %v472, 4294967208
        %v548 = vlaneseq
        %v549 = vshrl.u32 %v548, 7
        %v550 = vsub.s32 %v547, %v549
        %v551 = vrot.slane %v446, %v550
        %vm552 = vcmask 786112
        %v553 = vsel %vm552, %v551, %v546
        %v554 = vadd.s32 %v472, 4294967200
        %v555 = vlaneseq
        %v556 = vshrl.u32 %v555, 7
        %v557 = vsub.s32 %v554, %v556
        %v558 = vrot.slane %v448, %v557
        %vm559 = vcmask 851712
        %v560 = vsel %vm559, %v558, %v553
        %v561 = vadd.s32 %v472, 4294967192
        %v562 = vlaneseq
        %v563 = vshrl.u32 %v562, 7
        %v564 = vsub.s32 %v561, %v563
        %v565 = vrot.slane %v450, %v564
        %vm566 = vcmask 917312
        %v567 = vsel %vm566, %v565, %v560
        %v568 = vadd.s32 %v472, 4294967184
        %v569 = vlaneseq
        %v570 = vshrl.u32 %v569, 7
        %v571 = vsub.s32 %v568, %v570
        %v572 = vrot.slane %v452, %v571
        %vm573 = vcmask 982912
        %v574 = vsel %vm573, %v572, %v567
        %v575 = vadd.s32 %v472, 4294967176
        %v576 = vlaneseq
        %v577 = vshrl.u32 %v576, 7
        %v578 = vsub.s32 %v575, %v577
        %v579 = vrot.slane %v454, %v578
        %vm580 = vcmask 1048512
        %v581 = vsel %vm580, %v579, %v574
        %vm582 = vcmask 1042434
        %v583 = vsel %vm582, %v581, %v581
        %vm584 = vcmask 1043459
        %v585 = vsel %vm584, %v581, %v583
        %vm586 = vcmask 1044484
        %v587 = vsel %vm586, %v581, %v585
        %vm588 = vcmask 1045509
        %v589 = vsel %vm588, %v581, %v587
        %vm590 = vcmask 1046534
        %v591 = vsel %vm590, %v581, %v589
        %vm592 = vcmask 1047559
        %v593 = vsel %vm592, %v581, %v591
        %595 = vmatprep.subr.mxu0 0.0
        %596 = vmatpush1.xpose.msra.mxu0 %v306
        %597 = vmatprep.subr.mxu0 0.0
        %598 = vmatpush1.xpose.msra.mxu0 %v307
        %599 = vmatprep.subr.mxu0 0.0
        %600 = vmatpush1.xpose.msra.mxu0 %v308
        %601 = vmatprep.subr.mxu0 0.0
        %602 = vmatpush1.xpose.msra.mxu0 %v309
        %603 = vmatprep.subr.mxu0 0.0
        %604 = vmatpush1.xpose.msra.mxu0 %v310
        %605 = vmatprep.subr.mxu0 0.0
        %606 = vmatpush1.xpose.msra.mxu0 %v311
        %607 = vmatprep.subr.mxu0 0.0
        %608 = vmatpush1.xpose.msra.mxu0 %v312
        %609 = vmatprep.subr.mxu0 0.0
        %610 = vmatpush1.xpose.msra.mxu0 %v313
        %611 = vmatprep.subr.mxu0 0.0
        %612 = vmatpush1.xpose.msra.mxu0 %v314
        %613 = vmatprep.subr.mxu0 0.0
        %614 = vmatpush1.xpose.msra.mxu0 %v315
        %615 = vmatprep.subr.mxu0 0.0
        %616 = vmatpush1.xpose.msra.mxu0 %v316
        %617 = vmatprep.subr.mxu0 0.0
        %618 = vmatpush1.xpose.msra.mxu0 %v317
        %619 = vmatprep.subr.mxu0 0.0
        %620 = vmatpush1.xpose.msra.mxu0 %v318
        %621 = vmatprep.subr.mxu0 0.0
        %622 = vmatpush1.xpose.msra.mxu0 %v319
        %623 = vmatprep.subr.mxu0 0.0
        %624 = vmatpush1.xpose.msra.mxu0 %v320
        %625 = vmatprep.subr.mxu0 0.0
        %626 = vmatpush1.xpose.msra.mxu0 %v321
        %627 = vmatprep.subr.mxu0 0.0
        %628 = vmatpush1.xpose.msra.mxu0 0.0
        %629 = vmatprep.subr.mxu0 0.0
        %630 = vmatpush1.xpose.msra.mxu0 0.0
        %631 = vmatprep.subr.mxu0 0.0
        %632 = vmatpush1.xpose.msra.mxu0 0.0
        %633 = vmatprep.subr.mxu0 0.0
        %634 = vmatpush1.xpose.msra.mxu0 0.0
        %635 = vmatprep.subr.mxu0 0.0
        %636 = vmatpush1.xpose.msra.mxu0 0.0
        %637 = vmatprep.subr.mxu0 0.0
        %638 = vmatpush1.xpose.msra.mxu0 0.0
        %639 = vmatprep.subr.mxu0 0.0
        %640 = vmatpush1.xpose.msra.mxu0 0.0
        %641 = vmatprep.subr.mxu0 0.0
        %642 = vmatpush1.xpose.msra.mxu0 0.0
        %643 = vmatprep.subr.mxu0 0.0
        %644 = vmatpush1.xpose.msra.mxu0 0.0
        %645 = vmatprep.subr.mxu0 0.0
        %646 = vmatpush1.xpose.msra.mxu0 0.0
        %647 = vmatprep.subr.mxu0 0.0
        %648 = vmatpush1.xpose.msra.mxu0 0.0
        %649 = vmatprep.subr.mxu0 0.0
        %650 = vmatpush1.xpose.msra.mxu0 0.0
        %651 = vmatprep.subr.mxu0 0.0
        %652 = vmatpush1.xpose.msra.mxu0 0.0
        %653 = vmatprep.subr.mxu0 0.0
        %654 = vmatpush1.xpose.msra.mxu0 0.0
        %655 = vmatprep.subr.mxu0 0.0
        %656 = vmatpush1.xpose.msra.mxu0 0.0
        %657 = vmatprep.subr.mxu0 0.0
        %658 = vmatpush1.xpose.msra.mxu0 0.0
        %659 = vmatprep.mubr.f32.mxu0 0.0
        %660 = vmatmul.mubr.f32.gmra.mrb[0].mxu0 %v397
        %v661 = vpop.f32.mrb[0].mxu0
        %v662 = vadd.f32 %v593, %v661
        %v663 = vpop.f32.mrb[0].mxu0
        %664 = vdwg.mxu0
        %vm665 = vcmp.lt.s32.totalorder %v472, 4
        %v666 = vsel %vm665, %v662, -1e+30
        %667 = vmax.xlane.f32.xlu0 %v666
        %v668 = vpop.xlane.xlu0 %667
        %v669 = vsub.f32 %v666, %v668
        %v670 = vmul.f32 %v669, 1.442695
        %v671 = vpow.pop %v670
        %672 = vadd.xlane.f32.xlu0 %v671
        %v673 = vpop.xlane.xlu0 %672
        %v674 = vrcp.pop %v673
        %v675 = vmul.f32 %v671, %v674
        %676 = vmatprep.subr.mxu0 0.0
        %677 = vmatpush1.msra.mxu0 %v306
        %678 = vmatprep.subr.mxu0 0.0
        %679 = vmatpush1.msra.mxu0 %v307
        %680 = vmatprep.subr.mxu0 0.0
        %681 = vmatpush1.msra.mxu0 %v308
        %682 = vmatprep.subr.mxu0 0.0
        %683 = vmatpush1.msra.mxu0 %v309
        %684 = vmatprep.subr.mxu0 0.0
        %685 = vmatpush1.msra.mxu0 %v310
        %686 = vmatprep.subr.mxu0 0.0
        %687 = vmatpush1.msra.mxu0 %v311
        %688 = vmatprep.subr.mxu0 0.0
        %689 = vmatpush1.msra.mxu0 %v312
        %690 = vmatprep.subr.mxu0 0.0
        %691 = vmatpush1.msra.mxu0 %v313
        %692 = vmatprep.subr.mxu0 0.0
        %693 = vmatpush1.msra.mxu0 %v314
        %694 = vmatprep.subr.mxu0 0.0
        %695 = vmatpush1.msra.mxu0 %v315
        %696 = vmatprep.subr.mxu0 0.0
        %697 = vmatpush1.msra.mxu0 %v316
        %698 = vmatprep.subr.mxu0 0.0
        %699 = vmatpush1.msra.mxu0 %v317
        %700 = vmatprep.subr.mxu0 0.0
        %701 = vmatpush1.msra.mxu0 %v318
        %702 = vmatprep.subr.mxu0 0.0
        %703 = vmatpush1.msra.mxu0 %v319
        %704 = vmatprep.subr.mxu0 0.0
        %705 = vmatpush1.msra.mxu0 %v320
        %706 = vmatprep.subr.mxu0 0.0
        %707 = vmatpush1.msra.mxu0 %v321
        %708 = vmatprep.subr.mxu0 0.0
        %709 = vmatpush1.msra.mxu0 0.0
        %710 = vmatprep.subr.mxu0 0.0
        %711 = vmatpush1.msra.mxu0 0.0
        %712 = vmatprep.subr.mxu0 0.0
        %713 = vmatpush1.msra.mxu0 0.0
        %714 = vmatprep.subr.mxu0 0.0
        %715 = vmatpush1.msra.mxu0 0.0
        %716 = vmatprep.subr.mxu0 0.0
        %717 = vmatpush1.msra.mxu0 0.0
        %718 = vmatprep.subr.mxu0 0.0
        %719 = vmatpush1.msra.mxu0 0.0
        %720 = vmatprep.subr.mxu0 0.0
        %721 = vmatpush1.msra.mxu0 0.0
        %722 = vmatprep.subr.mxu0 0.0
        %723 = vmatpush1.msra.mxu0 0.0
        %724 = vmatprep.subr.mxu0 0.0
        %725 = vmatpush1.msra.mxu0 0.0
        %726 = vmatprep.subr.mxu0 0.0
        %727 = vmatpush1.msra.mxu0 0.0
        %728 = vmatprep.subr.mxu0 0.0
        %729 = vmatpush1.msra.mxu0 0.0
        %730 = vmatprep.subr.mxu0 0.0
        %731 = vmatpush1.msra.mxu0 0.0
        %732 = vmatprep.subr.mxu0 0.0
        %733 = vmatpush1.msra.mxu0 0.0
        %734 = vmatprep.subr.mxu0 0.0
        %735 = vmatpush1.msra.mxu0 0.0
        %736 = vmatprep.subr.mxu0 0.0
        %737 = vmatpush1.msra.mxu0 0.0
        %738 = vmatprep.subr.mxu0 0.0
        %739 = vmatpush1.msra.mxu0 0.0
        %740 = vmatprep.mubr.f32.mxu0 0.0
        %741 = vmatmul.mubr.f32.gmra.mrb[0].mxu0 %v675
        %v742 = vpop.f32.mrb[0].mxu0
        %v743 = vadd.f32 0.0, %v742
        %v744 = vpop.f32.mrb[0].mxu0
        %745 = vdwg.mxu0
        %746 = vst [vmem:[%s297] sm:$0xff] %v743
        %747 = vst [vmem:[%s304] sm:$0xff] %v675
        %s748 = sand.u32 %s131, 1
        %s749 = scalar_lea.sflag [#allocation4], %s748
        %s750 = sand.u32 %s131, 1
        %s751 = smul.addr %s750, 8
        %s752 = scalar_lea.vmem [#allocation8], %s751
        %s753 = sand.u32 %s157, 1
        %s754 = scalar_lea.sflag [#allocation10], %s753
        %s755 = sand.u32 %s157, 1
        %s756 = smul.addr %s755, 8
        %s757 = scalar_lea.vmem [#allocation9], %s756
        // Predicated region
        $region49: #{tpu_custom_call.1} parent=35 // pred_check
          %p758 = pneg %p141
        $region50: #{tpu_custom_call.1} parent=35 // pred_check_branch
          %760 = sbr.rel (%p758) target = $region52
        $region51: #{tpu_custom_call.1} parent=35 // pred_region
          %s762 = ssub.s32 128, 128
          %763 = vsyncadd %s749, %s762
          %s764 = smul.addr %s29, 128
          %s765 = scalar_lea.hbm %s4, %s764
          %s767 = sshll.u32 %s752, 4
          %s768 = int_to_ptr.vmem [resolvable:$true] %s767
          %770 = dma.vmem_to_hbm [thread:$0]  %s768, 128, %s765, %s749
        $region52: #{tpu_custom_call.1} parent=35 // pred_fallthru
          _
        // Predicated region
        $region53: #{tpu_custom_call.1} parent=35 // pred_check
          %p771 = pneg %p167
        $region54: #{tpu_custom_call.1} parent=35 // pred_check_branch
          %773 = sbr.rel (%p771) target = $region56
        $region55: #{tpu_custom_call.1} parent=35 // pred_region
          %s775 = ssub.s32 128, 128
          %776 = vsyncadd %s754, %s775
          %s777 = smul.addr %s29, 128
          %s778 = scalar_lea.hbm %s5, %s777
          %s780 = sshll.u32 %s757, 4
          %s781 = int_to_ptr.vmem [resolvable:$true] %s780
          %783 = dma.vmem_to_hbm [thread:$0]  %s781, 128, %s778, %s754
        $region56: #{tpu_custom_call.1} parent=35 // pred_fallthru
          _
      $region36: #{tpu_custom_call.1} parent=5 // pred_fallthru
        _
      %p784 = scmp.le.s32.totalorder 2, %s24
      // Predicated region
      $region57: #{tpu_custom_call.1} parent=5 // pred_check
        %p785 = pneg %p784
      $region58: #{tpu_custom_call.1} parent=5 // pred_check_branch
        %787 = sbr.rel (%p785) target = $region60
      $region59: #{tpu_custom_call.1} parent=5 // pred_region
        %s788 = ssub.s32 %s24, 2
        // Predicated region
        $region61: #{tpu_custom_call.1} parent=59 // pred_check
          %p789 = pneg %p147
        $region62: #{tpu_custom_call.1} parent=59 // pred_check_branch
          %791 = sbr.rel (%p789) target = $region64
        $region63: #{tpu_custom_call.1} parent=59 // pred_region
          %s792 = sand.u32 %s132, 1
          %s793 = scalar_lea.sflag [#allocation4], %s792
          %s794 = sand.u32 %s132, 1
          %s795 = smul.addr %s794, 8
          %s796 = scalar_lea.vmem [#allocation8], %s795
          %797 = dma.done %s793, 128
        $region64: #{tpu_custom_call.1} parent=59 // pred_fallthru
          _
        // Predicated region
        $region65: #{tpu_custom_call.1} parent=59 // pred_check
          %p798 = pneg %p173
        $region66: #{tpu_custom_call.1} parent=59 // pred_check_branch
          %800 = sbr.rel (%p798) target = $region68
        $region67: #{tpu_custom_call.1} parent=59 // pred_region
          %s801 = sand.u32 %s158, 1
          %s802 = scalar_lea.sflag [#allocation10], %s801
          %s803 = sand.u32 %s158, 1
          %s804 = smul.addr %s803, 8
          %s805 = scalar_lea.vmem [#allocation9], %s804
          %806 = dma.done %s802, 128
        $region68: #{tpu_custom_call.1} parent=59 // pred_fallthru
          _
      $region60: #{tpu_custom_call.1} parent=5 // pred_fallthru
        _
    $region6: #{tpu_custom_call.1} parent=1 // loop_footer
      %s28 = sadd.s32 1, %s24
    $region7: #{tpu_custom_call.1} parent=1 // loop_footer_branch
      %23 = sbr.rel target = $region3
    $region8: #{tpu_custom_call.1} parent=1 // loop_exit
      _
    %807 = vsyncpa [#allocation3], 1
    %s808 = scalar_lea.sflag [#allocation3], 1
    %809 = vsyncpa %s808, 1
    %810 = vsyncpa [#allocation6], 1
    %s811 = scalar_lea.sflag [#allocation6], 1
    %812 = vsyncpa %s811, 1
    %813 = vsyncpa [#allocation4], 1
    %s814 = scalar_lea.sflag [#allocation4], 1
    %815 = vsyncpa %s814, 1
    %816 = vsyncpa [#allocation10], 1
    %s817 = scalar_lea.sflag [#allocation10], 1
    %818 = vsyncpa %s817, 1

</llo_original>
